<compile_context>
chip_gen: v5e
topology: v5e:2x2
jax: 0.10.0
libtpu: 0.0.40
codegen_flags: <defaults>
</compile_context>

<pallas_src>
import functools

import jax
import jax.numpy as jnp
from jax import lax
from jax.experimental import pallas as pl
from jax.experimental.pallas import tpu as pltpu


_MIB = 1024 * 1024


def _vmem_plan(c, in_itemsize):
    """Per-generation VMEM limit / per-step byte budget / per-row VMEM cost."""
    try:
        cap = pltpu.get_tpu_info().vmem_capacity_bytes
    except Exception:
        cap = 64 * _MIB  # conservative fallback (v7x-sized)
    if cap <= 80 * _MIB:
        # v7x-class part: 64 MiB physical VMEM -> keep well clear of it.
        vmem_limit = 40 * _MIB
        step_budget = 24 * _MIB
    else:
        # v5e / v6e: 128 MiB physical VMEM.
        vmem_limit = 64 * _MIB
        step_budget = 40 * _MIB
    # Per-row VMEM cost of one grid step:
    #   - double-buffered logits tile at the INPUT dtype width,
    #   - ~3 live f32 (T, C) temporaries (shifted, exp, one-hot/select),
    #   - double-buffered int32 label column (pads to 128 lanes in VMEM).
    bytes_per_row = c * (2 * in_itemsize + 3 * 4) + 2 * 128 * 4
    return vmem_limit, step_budget, bytes_per_row


def _choose_tile_n(n, step_budget, bytes_per_row):
    """Rows per grid step: as many as fit the VMEM step budget (multiple of 8)."""
    max_rows = max(8, step_budget // bytes_per_row)
    tile = max(8, (max_rows // 8) * 8)
    if tile >= n:
        if n >= 16:
            # Guarantee >= 2 grid steps so dimension_semantics=("parallel",)
            # can shard work across v7x's two TensorCores.
            half = -(-n // 2)
            tile = -(-half // 8) * 8
        else:
            tile = n  # single full-array tile is always a legal block shape
    return tile


def _ce_partial_kernel(pred_ref, label_ref, partial_ref, *, n_total, tile_n):
    # pred_ref:    (TILE_N, C) logits tile in VMEM
    # label_ref:   (TILE_N, 1) int32 targets tile in VMEM
    # partial_ref: (1, 8, 128) f32 output block (per-tile partial sum, bcast)
    i = pl.program_id(0)

    logits = pred_ref[...].astype(jnp.float32)                # (T, C)
    labels = label_ref[...]                                   # (T, 1) int32
    t, c = logits.shape

    # Rows past the true N (padded last tile) must contribute 0 to the sum.
    row_ids = i * tile_n + lax.broadcasted_iota(jnp.int32, (t, 1), 0)
    valid = row_ids < n_total                                 # (T, 1) bool

    # Numerically-stable per-row log-sum-exp (EUP/XLU work, hidden under DMA).
    row_max = jnp.max(logits, axis=-1, keepdims=True)         # (T, 1)
    shifted = logits - row_max                                # (T, C)
    sum_exp = jnp.sum(jnp.exp(shifted), axis=-1, keepdims=True)

    # Gather shifted[i, label[i]] via lane-iota one-hot select (no gather op).
    # NOTE: per_example = log(sum_exp) - picked_shifted; row_max cancels
    # exactly, so we never add it back (fewer ops, better precision).
    col_ids = lax.broadcasted_iota(jnp.int32, (t, c), 1)      # (T, C)
    picked_shifted = jnp.sum(jnp.where(col_ids == labels, shifted, 0.0),
                             axis=-1, keepdims=True)          # (T, 1)

    # jnp.where (select) is required here: garbage padding rows may produce
    # NaN/Inf, which select discards but multiply-by-mask would not.
    per_example = jnp.where(valid, jnp.log(sum_exp) - picked_shifted, 0.0)
    tile_sum = jnp.sum(per_example)                           # scalar f32

    partial_ref[...] = jnp.broadcast_to(tile_sum, partial_ref.shape)
    # TODO(synk): if a bundle dump on v7x shows the VPU/XLU slots saturating,
    # offload the two lane-sum reductions to the idle MXU via a ones-vector
    # matmul; HBM is the hard ceiling on v5e/v6e so it is not done here.


def tsp_criterion(pred, label, *, tile_n=None):
    """Mean cross-entropy over (N, C) logits and (N,) integer labels.

    On v5e/v6e this kernel is purely HBM-bound: pass bf16 logits to halve
    HBM traffic (~2x wall clock); the in-kernel math stays in f32.
    """
    n, c = pred.shape
    label2d = label.astype(jnp.int32).reshape(n, 1)

    in_itemsize = jnp.dtype(pred.dtype).itemsize
    vmem_limit, step_budget, bytes_per_row = _vmem_plan(c, in_itemsize)
    if tile_n is None:
        tile_n = _choose_tile_n(n, step_budget, bytes_per_row)
    num_tiles = (n + tile_n - 1) // tile_n

    kernel = functools.partial(_ce_partial_kernel, n_total=n, tile_n=tile_n)

    partials = pl.pallas_call(
        kernel,
        out_shape=jax.ShapeDtypeStruct((num_tiles, 8, 128), jnp.float32),
        grid_spec=pltpu.PrefetchScalarGridSpec(
            num_scalar_prefetch=0,
            grid=(num_tiles,),
            in_specs=[
                pl.BlockSpec((tile_n, c), lambda i: (i, 0)),
                pl.BlockSpec((tile_n, 1), lambda i: (i, 0)),
            ],
            out_specs=pl.BlockSpec((1, 8, 128), lambda i: (i, 0, 0)),
        ),
        compiler_params=pltpu.CompilerParams(
            dimension_semantics=("parallel",),
            vmem_limit_bytes=vmem_limit,
        ),
    )(pred, label2d)

    # Reduce per-tile partial sums; divide by the TRUE N (mean reduction).
    return jnp.sum(partials[:, 0, 0]) / jnp.float32(n)


if __name__ == "__main__":
    key = jax.random.PRNGKey(0)

    def _ref_loss(pred, label):
        logp = jax.nn.log_softmax(pred.astype(jnp.float32), axis=-1)
        return -jnp.mean(logp[jnp.arange(pred.shape[0]), label])

    k1, k2, k3, k4, k5, k6 = jax.random.split(key, 6)

    # Case 1: tiny shape, single tile (matches the module's toy usage).
    n1, c1 = 8, 32
    pred1 = jax.random.normal(k1, (n1, c1), dtype=jnp.float32)
    label1 = jax.random.randint(k2, (n1,), 0, c1, dtype=jnp.int32)
    loss1 = tsp_criterion(pred1, label1)
    jax.block_until_ready(loss1)
    ref1 = _ref_loss(pred1, label1)
    assert jnp.allclose(loss1, ref1, rtol=1e-5, atol=1e-5), (loss1, ref1)

    # Case 2: multi-tile grid with a masked partial last tile (N % TILE_N != 0).
    n2, c2 = 20, 128
    pred2 = jax.random.normal(k3, (n2, c2), dtype=jnp.float32)
    label2 = jax.random.randint(k4, (n2,), 0, c2, dtype=jnp.int32)
    loss2 = tsp_criterion(pred2, label2, tile_n=8)   # grid=(3,), last tile masked
    jax.block_until_ready(loss2)
    ref2 = _ref_loss(pred2, label2)
    assert jnp.allclose(loss2, ref2, rtol=1e-5, atol=1e-5), (loss2, ref2)

    # Case 3: auto tile sizing exercises the >=2-tile split + bf16 input path.
    n3, c3 = 48, 64
    pred3 = jax.random.normal(k5, (n3, c3), dtype=jnp.float32).astype(jnp.bfloat16)
    label3 = jax.random.randint(k6, (n3,), 0, c3, dtype=jnp.int32)
    loss3 = tsp_criterion(pred3, label3)             # auto tile -> 2 balanced tiles
    jax.block_until_ready(loss3)
    ref3 = _ref_loss(pred3.astype(jnp.float32), label3)
    assert jnp.allclose(loss3, ref3, rtol=2e-2, atol=2e-2), (loss3, ref3)

    print("KERNEL_OK")
</pallas_src>

<mosaic_0001>
module attributes {stable_mosaic.version = 11 : i64} {
  func.func @_ce_partial_kernel(%arg0: i32, %arg1: memref<8x32xf32, #tpu.memory_space<vmem>>, %arg2: memref<8x1xi32, #tpu.memory_space<vmem>>, %arg3: memref<1x8x128xf32, #tpu.memory_space<vmem>>) attributes {dimension_semantics = [#tpu.dimension_semantics<parallel>], iteration_bounds = array<i64: 1>, scalar_prefetch = 0 : i64, scratch_operands = 0 : i64, tpu.core_type = #tpu.core_type<tc>, window_params = [{transform_indices = @transform_0, window_bounds = array<i64: 8, 32>}, {transform_indices = @transform_1, window_bounds = array<i64: 8, 1>}, {transform_indices = @transform_2, window_bounds = array<i64: 1, 8, 128>}]} {
    %c0 = arith.constant 0 : index
    %c0_0 = arith.constant 0 : index
    %0 = vector.load %arg1[%c0, %c0_0] : memref<8x32xf32, #tpu.memory_space<vmem>>, vector<8x32xf32>
    %c0_1 = arith.constant 0 : index
    %c0_2 = arith.constant 0 : index
    %1 = vector.load %arg2[%c0_1, %c0_2] : memref<8x1xi32, #tpu.memory_space<vmem>>, vector<8x1xi32>
    %c8_i32 = arith.constant 8 : i32
    %2 = arith.muli %arg0, %c8_i32 : i32
    %3 = tpu.iota {dimensions = array<i32: 0>} : vector<8x1xi32>
    %4 = vector.broadcast %2 : i32 to vector<8x1xi32>
    %5 = arith.addi %4, %3 : vector<8x1xi32>
    %c8_i32_3 = arith.constant 8 : i32
    %6 = vector.broadcast %c8_i32_3 : i32 to vector<8x1xi32>
    %7 = arith.cmpi slt, %5, %6 : vector<8x1xi32>
    %cst = arith.constant dense<0xFF800000> : vector<8xf32>
    %8 = vector.multi_reduction <maximumf>, %0, %cst [1] : vector<8x32xf32> to vector<8xf32>
    %9 = vector.shape_cast %8 : vector<8xf32> to vector<8x1xf32>
    %10 = vector.broadcast %9 : vector<8x1xf32> to vector<8x32xf32>
    %11 = arith.subf %0, %10 : vector<8x32xf32>
    %12 = math.exp %11 : vector<8x32xf32>
    %cst_4 = arith.constant dense<0.000000e+00> : vector<8xf32>
    %13 = vector.multi_reduction <add>, %12, %cst_4 [1] : vector<8x32xf32> to vector<8xf32>
    %14 = vector.shape_cast %13 : vector<8xf32> to vector<8x1xf32>
    %15 = tpu.iota {dimensions = array<i32: 1>} : vector<8x32xi32>
    %16 = vector.broadcast %1 : vector<8x1xi32> to vector<8x32xi32>
    %17 = arith.cmpi eq, %15, %16 : vector<8x32xi32>
    %cst_5 = arith.constant 0.000000e+00 : f32
    %18 = vector.broadcast %cst_5 : f32 to vector<8x32xf32>
    %19 = arith.select %17, %11, %18 : vector<8x32xi1>, vector<8x32xf32>
    %cst_6 = arith.constant dense<0.000000e+00> : vector<8xf32>
    %20 = vector.multi_reduction <add>, %19, %cst_6 [1] : vector<8x32xf32> to vector<8xf32>
    %21 = vector.shape_cast %20 : vector<8xf32> to vector<8x1xf32>
    %22 = math.log %14 : vector<8x1xf32>
    %23 = arith.subf %22, %21 : vector<8x1xf32>
    %cst_7 = arith.constant 0.000000e+00 : f32
    %24 = vector.broadcast %cst_7 : f32 to vector<8x1xf32>
    %25 = arith.select %7, %23, %24 : vector<8x1xi1>, vector<8x1xf32>
    %26 = vector.shape_cast %25 : vector<8x1xf32> to vector<1x8x1xf32>
    %cst_8 = arith.constant dense<0.000000e+00> : vector<1xf32>
    %27 = vector.multi_reduction <add>, %26, %cst_8 [1, 2] : vector<1x8x1xf32> to vector<1xf32>
    %28 = vector.shape_cast %27 : vector<1xf32> to vector<1x1x1xf32>
    %29 = vector.extract %28[0, 0, 0] : f32 from vector<1x1x1xf32>
    %30 = vector.broadcast %29 : f32 to vector<1x8x128xf32>
    %c0_9 = arith.constant 0 : index
    %c0_10 = arith.constant 0 : index
    %c0_11 = arith.constant 0 : index
    %31 = vector.load %arg3[%c0_9, %c0_10, %c0_11] : memref<1x8x128xf32, #tpu.memory_space<vmem>>, vector<1x8x128xf32>
    tpu.vector_store %arg3[%c0_9, %c0_10, %c0_11], %30 {strides = array<i32>} : memref<1x8x128xf32, #tpu.memory_space<vmem>>, vector<1x8x128xf32>,
    return
  }
  func.func @transform_0(%arg0: i32) -> (i32, i32) {
    %c0_i32 = arith.constant 0 : i32
    %c0_i32_0 = arith.constant 0 : i32
    return %arg0, %c0_i32 : i32, i32
  }
  func.func @transform_1(%arg0: i32) -> (i32, i32) {
    %c0_i32 = arith.constant 0 : i32
    %c0_i32_0 = arith.constant 0 : i32
    return %arg0, %c0_i32 : i32, i32
  }
  func.func @transform_2(%arg0: i32) -> (i32, i32, i32) {
    %c0_i32 = arith.constant 0 : i32
    %c0_i32_0 = arith.constant 0 : i32
    %c0_i32_1 = arith.constant 0 : i32
    return %arg0, %c0_i32, %c0_i32_0 : i32, i32, i32
  }
}

</mosaic_0001>

<llo_original>
// kernel: tpu_custom_call.1
$region0: #{tpu_custom_call.1}
  #allocation0 [shape = 'u32[]', space=smem, size = 0x4, offset = 0x4, fixed_abs, tag = 'smem constant byte address 0x4 - core index']
  #allocation1 [shape = 'u32[72,128]{1,0:T(1,128)}', space=vmem, size = 0x9000, scoped, tag = 'internal scratch']
  %s0 = inlined_call_operand.vmem [shape: f32[8,32], index: 0, kind: input, shape index: {}]
  %s1 = inlined_call_operand.vmem [shape: s32[8,1], index: 1, kind: input, shape index: {}]
  %s2 = inlined_call_operand.hbm [shape: f32[1,8,128], index: 2, kind: output, shape index: {}]
  %s3 = sld [smem:[#allocation0]]
  $region18: #{tpu_custom_call.1} parent=0
    _
  %s5 = ssub.s32 1, %s3
  %s6 = scalar_select 0, %s5, %s3
  $region1: #{tpu_custom_call.1} parent=0
    #allocation2 [shape = 'u8[4096]{0}', space=vmem, size = 0x1000, scoped, tag = 'output window, operand 0, single buffered']
    #allocation3 [shape = 's32[1]{0}', space=sflag, size = 0x4, scoped, tag = 'scoped memory for tpu_custom_call.1']
    %7 = vsyncpa [#allocation3], 0
    // Predicated region
    $region2: #{tpu_custom_call.1} parent=1 // pred_check
      _
    $region3: #{tpu_custom_call.1} parent=1 // pred_check_branch
      %9 = sbr.rel (0) target = $region5
    $region4: #{tpu_custom_call.1} parent=1 // pred_region
      _
    $region5: #{tpu_custom_call.1} parent=1 // pred_fallthru
      _
    // Predicated region
    $region6: #{tpu_custom_call.1} parent=1 // pred_check
      _
    $region7: #{tpu_custom_call.1} parent=1 // pred_check_branch
      %11 = sbr.rel (0) target = $region9
    $region8: #{tpu_custom_call.1} parent=1 // pred_region
      _
    $region9: #{tpu_custom_call.1} parent=1 // pred_fallthru
      _
    %v12 = vld [vmem:[%s0] sm:$0xff]
    %v13 = vld [vmem:[%s1] sm:$0xff]
    %s14 = smul.u32 0, 8
    %v15 = vlaneseq
    %v16 = vshrl.u32 %v15, 7
    %v17 = vstv %s14
    %v18 = vadd.s32 %v17, %v16
    %vm19 = vcmp.lt.s32.totalorder %v18, 8
    %vm20 = vcmask 261120
    %v21 = vsel %vm20, %v12, -inf
    %22 = vmax.xlane.f32.xlu0 %v21
    %v23 = vpop.xlane.xlu0 %22
    %v24 = vsub.f32 %v12, %v23
    %v25 = vmul.f32 %v24, 1.442695
    %v26 = vpow.pop %v25
    %v27 = vsel %vm20, %v26, 0.0
    %28 = vadd.xlane.f32.xlu0 %v27
    %v29 = vpop.xlane.xlu0 %28
    %v30 = vlaneseq
    %v31 = vand.u32 %v30, 127
    %32 = vset.pattern.permute.xlu0 0
    %33 = vperm.xlu0 %32, %v13
    %v34 = vpop.permute.xlu0 %33
    %vm35 = vcmp.eq.s32.totalorder %v31, %v34
    %v36 = vsel %vm35, %v24, 0.0
    %v37 = vsel %vm20, %v36, 0.0
    %38 = vadd.xlane.f32.xlu0 %v37
    %v39 = vpop.xlane.xlu0 %38
    %v40 = vlog2.pop %v29
    %v41 = vmul.f32 %v40, 0.6931472
    %v42 = vsub.f32 %v41, %v39
    %v43 = vsel %vm19, %v42, 0.0
    %vm44 = vcmask 7168
    %v45 = vsel %vm44, %v43, 0.0
    %46 = vadd.xlane.f32.xlu0 %v45
    %v47 = vpop.xlane.xlu0 %46
    %v48 = vrot.slane %v47, 4
    %v49 = vadd.f32 %v47, %v48
    %v50 = vrot.slane %v49, 2
    %v51 = vadd.f32 %v49, %v50
    %v52 = vrot.slane %v51, 1
    %v53 = vadd.f32 %v51, %v52
    %s54 = vtos %v53
    %v55 = vstv %s54
    %56 = vst [vmem:[#allocation2] sm:$0xff] %v55
    // Predicated region
    $region10: #{tpu_custom_call.1} parent=1 // pred_check
      _
    $region11: #{tpu_custom_call.1} parent=1 // pred_check_branch
      %58 = sbr.rel (0) target = $region13
    $region12: #{tpu_custom_call.1} parent=1 // pred_region
      %60 = vsyncadd [#allocation3], 0
      %s62 = sshll.u32 [#allocation2], 4
      %s63 = int_to_ptr.vmem [resolvable:$true] %s62
      %s64 = sshll.u32 %s2, 4
      %s65 = int_to_ptr.hbm [resolvable:$true] %s64
      %67 = dma.vmem_to_hbm [thread:$0]  %s63, 128, %s65, [#allocation3]
    $region13: #{tpu_custom_call.1} parent=1 // pred_fallthru
      _
    // Predicated region
    $region14: #{tpu_custom_call.1} parent=1 // pred_check
      _
    $region15: #{tpu_custom_call.1} parent=1 // pred_check_branch
      %69 = sbr.rel (0) target = $region17
    $region16: #{tpu_custom_call.1} parent=1 // pred_region
      %71 = dma.done [#allocation3], 128
    $region17: #{tpu_custom_call.1} parent=1 // pred_fallthru
      _
    %72 = vsyncpa [#allocation3], 1

</llo_original>
